<compile_context>
chip_gen: v7x
topology: tpu7x:2x2x1
jax: 0.10.0
libtpu: 0.0.40
codegen_flags: <defaults>
</compile_context>

<pallas_src>
import functools

import jax
import jax.numpy as jnp
from jax.experimental import pallas as pl
from jax.experimental.pallas import tpu as pltpu

LANES = 128
MAX_BLK_ROWS = 8192      # 8192 x 128 x f32 = 4 MiB per stream per buffer
STRIP_ROWS = 64          # rows consumed per inner step (8 f32 vregs / stream)
N_CORE_SPLIT = 2         # leading "parallel" grid axis (both TCs on v7x)


def _dice_partial_kernel(x_ref, t_ref, out_ref, acc_st, acc_s, acc_t, *,
                         rows, blk_rows, strip_rows, blocks_per_group):
    c = pl.program_id(0)          # core group (parallel axis)
    j = pl.program_id(1)          # step within group (reduction axis)

    @pl.when(j == 0)
    def _init():
        acc_st[...] = jnp.zeros_like(acc_st)
        acc_s[...] = jnp.zeros_like(acc_s)
        acc_t[...] = jnp.zeros_like(acc_t)

    # Row-granular validity for this block (int32-safe for n < 2**38 elements;
    # no per-element index arithmetic).
    block_row0 = (c * blocks_per_group + j) * blk_rows
    remaining = rows - block_row0          # valid rows in this block (may be <= 0)

    def strip_accum(r0, masked):
        xs = x_ref[pl.ds(r0, strip_rows), :].astype(jnp.float32)
        ts = t_ref[pl.ds(r0, strip_rows), :].astype(jnp.float32)
        # NOTE: if profiling on v7x shows the EUP binding, swap to
        # 0.5 * jnp.tanh(0.5 * xs) + 0.5 (single transcendental push).
        s = jax.nn.sigmoid(xs)
        if masked:
            row_ids = r0 + jax.lax.broadcasted_iota(
                jnp.int32, (strip_rows, LANES), 0)
            valid = row_ids < remaining
            s = jnp.where(valid, s, 0.0)
            ts = jnp.where(valid, ts, 0.0)
        acc_st[...] += s * ts
        acc_s[...] += s
        acc_t[...] += ts

    n_strips = blk_rows // strip_rows

    def accumulate(masked):
        if n_strips <= 8:                      # short: fully unroll in Python
            for k in range(n_strips):
                strip_accum(k * strip_rows, masked)
        else:
            def body(k, carry):
                strip_accum(pl.multiple_of(k * strip_rows, strip_rows), masked)
                return carry
            jax.lax.fori_loop(0, n_strips, body, 0)

    # Fast path for interior (full) blocks: no mask ops at all.
    @pl.when(remaining >= blk_rows)
    def _full():
        accumulate(masked=False)

    # Ragged / overhanging blocks (including the clamped duplicate of the last
    # group): row-level mask zeroes every invalid row's contribution.
    @pl.when(remaining < blk_rows)
    def _ragged():
        accumulate(masked=True)

    @pl.when(j == pl.num_programs(1) - 1)
    def _finalize():
        out_ref[0, 0, :] = jnp.sum(acc_st[...], axis=0)
        out_ref[0, 1, :] = jnp.sum(acc_s[...], axis=0)
        out_ref[0, 2, :] = jnp.sum(acc_t[...], axis=0)


def _vmem_budget_bytes():
    """Per-generation scoped-VMEM budget for this kernel."""
    try:
        cap = pltpu.get_tpu_info().vmem_capacity_bytes
    except Exception:                          # conservative fallback
        cap = 64 << 20
    # Stay well under physical VMEM: 48 MiB on 128-MiB parts (v5e/v6e, whose
    # scoped defaults are only 16/32 MiB), 32 MiB on 64-MiB parts (v7x).
    return int(min(cap // 2, 48 << 20))


def dice_loss(inputs, targets, smooth=1e-05):
    """Pallas implementation of DiceLoss.forward (returns an f32 scalar)."""
    x = jnp.reshape(inputs, (-1,))
    t = jnp.reshape(targets, (-1,))
    if x.dtype == jnp.bool_:
        x = x.astype(jnp.int8)
    if t.dtype == jnp.bool_:
        t = t.astype(jnp.int8)
    n = x.shape[0]

    # dtype-aware row granule: 8 rows for 32-bit, 16 for 16-bit, 32 for 8-bit.
    min_item = min(x.dtype.itemsize, t.dtype.itemsize)
    granule_rows = max(8, 32 // min_item)
    granule = granule_rows * LANES
    n_main = (n // granule) * granule          # aligned prefix: no pad copy

    sum_st = jnp.float32(0.0)
    sum_s = jnp.float32(0.0)
    sum_t = jnp.float32(0.0)

    if n_main > 0:
        rows = n_main // LANES
        bytes_per_row = LANES * (x.dtype.itemsize + t.dtype.itemsize)
        budget = _vmem_budget_bytes()
        # 2 streams x 2 pipeline buffers per block, ~4 MiB headroom for
        # accumulators / temporaries / internal scratch.
        max_rows_by_vmem = max(granule_rows,
                               (budget - (4 << 20)) // (2 * bytes_per_row))
        blk_rows = min(rows, MAX_BLK_ROWS, max_rows_by_vmem)
        blk_rows = max(granule_rows, (blk_rows // granule_rows) * granule_rows)
        if blk_rows >= STRIP_ROWS:
            blk_rows = (blk_rows // STRIP_ROWS) * STRIP_ROWS
            strip_rows = STRIP_ROWS
        else:
            strip_rows = blk_rows

        total_blocks = pl.cdiv(rows, blk_rows)
        n_split = min(N_CORE_SPLIT, total_blocks)
        blocks_per_group = pl.cdiv(total_blocks, n_split)

        x2 = x[:n_main].reshape(rows, LANES)
        t2 = t[:n_main].reshape(rows, LANES)

        def in_map(ci, ji):
            # Clamp so the (rare) overhanging step of the last group maps to a
            # real block; its contribution is masked to zero in-kernel.
            return (jnp.minimum(ci * blocks_per_group + ji, total_blocks - 1), 0)

        blk_spec = pl.BlockSpec((blk_rows, LANES), in_map)

        partials = pl.pallas_call(
            functools.partial(_dice_partial_kernel, rows=rows,
                              blk_rows=blk_rows, strip_rows=strip_rows,
                              blocks_per_group=blocks_per_group),
            out_shape=jax.ShapeDtypeStruct((n_split, 3, LANES), jnp.float32),
            grid_spec=pltpu.PrefetchScalarGridSpec(
                num_scalar_prefetch=0,
                grid=(n_split, blocks_per_group),
                in_specs=[blk_spec, blk_spec],
                out_specs=pl.BlockSpec((1, 3, LANES),
                                       lambda ci, ji: (ci, 0, 0)),
                scratch_shapes=[
                    pltpu.VMEM((strip_rows, LANES), jnp.float32),  # sum(s * t)
                    pltpu.VMEM((strip_rows, LANES), jnp.float32),  # sum(s)
                    pltpu.VMEM((strip_rows, LANES), jnp.float32),  # sum(t)
                ],
            ),
            compiler_params=pltpu.CompilerParams(
                dimension_semantics=("parallel", "arbitrary"),
                vmem_limit_bytes=budget,
            ),
        )(x2, t2)

        totals = jnp.sum(partials, axis=(0, 2))
        sum_st = sum_st + totals[0]
        sum_s = sum_s + totals[1]
        sum_t = sum_t + totals[2]

    if n_main < n:
        # Ragged tail (< granule elements): tiny, plain-JAX reduction folded
        # into the epilogue math instead of padding / rewriting both streams.
        xt = x[n_main:].astype(jnp.float32)
        tt = t[n_main:].astype(jnp.float32)
        st = jax.nn.sigmoid(xt)
        sum_st = sum_st + jnp.sum(st * tt)
        sum_s = sum_s + jnp.sum(st)
        sum_t = sum_t + jnp.sum(tt)

    smooth = jnp.asarray(smooth, jnp.float32)
    dice = (2.0 * sum_st + smooth) / (sum_s + sum_t + smooth)
    return jnp.float32(1.0) - dice


def _reference_dice_loss(inputs, targets, smooth=1e-05):
    x = jax.nn.sigmoid(inputs.astype(jnp.float32)).reshape(-1)
    t = targets.astype(jnp.float32).reshape(-1)
    intersection = jnp.sum(x * t)
    dice = (2.0 * intersection + smooth) / (jnp.sum(x) + jnp.sum(t) + smooth)
    return 1.0 - dice


if __name__ == "__main__":
    key = jax.random.PRNGKey(0)
    k1, k2 = jax.random.split(key)
    # Logits (pre-sigmoid) and binary targets, NCHW-like shape (2, 4, 16, 16).
    inputs = jax.random.normal(k1, (2, 4, 16, 16), dtype=jnp.float32)
    targets = (jax.random.uniform(k2, (2, 4, 16, 16)) > 0.5).astype(jnp.float32)

    loss = jax.block_until_ready(dice_loss(inputs, targets))
    ref = jax.block_until_ready(_reference_dice_loss(inputs, targets))

    assert jnp.allclose(loss, ref, rtol=1e-5, atol=1e-6), (loss, ref)
    print("KERNEL_OK")
</pallas_src>

<mosaic_0001>
module attributes {stable_mosaic.version = 11 : i64} {
  func.func @_dice_partial_kernel(%arg0: i32, %arg1: i32, %arg2: memref<16x128xf32, #tpu.memory_space<vmem>>, %arg3: memref<16x128xf32, #tpu.memory_space<vmem>>, %arg4: memref<1x3x128xf32, #tpu.memory_space<vmem>>, %arg5: memref<16x128xf32, #tpu.memory_space<vmem>>, %arg6: memref<16x128xf32, #tpu.memory_space<vmem>>, %arg7: memref<16x128xf32, #tpu.memory_space<vmem>>) attributes {dimension_semantics = [#tpu.dimension_semantics<parallel>, #tpu.dimension_semantics<arbitrary>], iteration_bounds = array<i64: 1, 1>, scalar_prefetch = 0 : i64, scratch_operands = 3 : i64, tpu.core_type = #tpu.core_type<tc>, window_params = [{transform_indices = @transform_0, window_bounds = array<i64: 16, 128>}, {transform_indices = @transform_1, window_bounds = array<i64: 16, 128>}, {transform_indices = @transform_2, window_bounds = array<i64: 1, 3, 128>}]} {
    %c0_i32 = arith.constant 0 : i32
    %0 = arith.cmpi eq, %arg1, %c0_i32 : i32
    %1 = arith.extui %0 : i1 to i32
    %c0_i32_0 = arith.constant 0 : i32
    %2 = arith.cmpi ne, %1, %c0_i32_0 : i32
    scf.if %2 {
      %cst = arith.constant 0.000000e+00 : f32
      %16 = vector.broadcast %cst : f32 to vector<16x128xf32>
      %c0 = arith.constant 0 : index
      %c0_8 = arith.constant 0 : index
      %17 = vector.load %arg5[%c0, %c0_8] : memref<16x128xf32, #tpu.memory_space<vmem>>, vector<16x128xf32>
      tpu.vector_store %arg5[%c0, %c0_8], %16 {strides = array<i32>} : memref<16x128xf32, #tpu.memory_space<vmem>>, vector<16x128xf32>,
      %cst_9 = arith.constant 0.000000e+00 : f32
      %18 = vector.broadcast %cst_9 : f32 to vector<16x128xf32>
      %c0_10 = arith.constant 0 : index
      %c0_11 = arith.constant 0 : index
      %19 = vector.load %arg6[%c0_10, %c0_11] : memref<16x128xf32, #tpu.memory_space<vmem>>, vector<16x128xf32>
      tpu.vector_store %arg6[%c0_10, %c0_11], %18 {strides = array<i32>} : memref<16x128xf32, #tpu.memory_space<vmem>>, vector<16x128xf32>,
      %cst_12 = arith.constant 0.000000e+00 : f32
      %20 = vector.broadcast %cst_12 : f32 to vector<16x128xf32>
      %c0_13 = arith.constant 0 : index
      %c0_14 = arith.constant 0 : index
      %21 = vector.load %arg7[%c0_13, %c0_14] : memref<16x128xf32, #tpu.memory_space<vmem>>, vector<16x128xf32>
      tpu.vector_store %arg7[%c0_13, %c0_14], %20 {strides = array<i32>} : memref<16x128xf32, #tpu.memory_space<vmem>>, vector<16x128xf32>,
    } else {
    }
    %c1_i32 = arith.constant 1 : i32
    %3 = arith.muli %arg0, %c1_i32 : i32
    %4 = arith.addi %3, %arg1 : i32
    %c16_i32 = arith.constant 16 : i32
    %5 = arith.muli %4, %c16_i32 : i32
    %c16_i32_1 = arith.constant 16 : i32
    %6 = arith.subi %c16_i32_1, %5 : i32
    %c16_i32_2 = arith.constant 16 : i32
    %7 = arith.cmpi sge, %6, %c16_i32_2 : i32
    %8 = arith.extui %7 : i1 to i32
    %c0_i32_3 = arith.constant 0 : i32
    %9 = arith.cmpi ne, %8, %c0_i32_3 : i32
    scf.if %9 {
      %c0 = arith.constant 0 : index
      %c0_8 = arith.constant 0 : index
      %16 = vector.load %arg2[%c0, %c0_8] : memref<16x128xf32, #tpu.memory_space<vmem>>, vector<16x128xf32>
      %c0_9 = arith.constant 0 : index
      %c0_10 = arith.constant 0 : index
      %17 = vector.load %arg3[%c0_9, %c0_10] : memref<16x128xf32, #tpu.memory_space<vmem>>, vector<16x128xf32>
      %18 = arith.negf %16 : vector<16x128xf32>
      %19 = math.exp %18 : vector<16x128xf32>
      %cst = arith.constant 1.000000e+00 : f32
      %20 = vector.broadcast %cst : f32 to vector<16x128xf32>
      %21 = arith.addf %20, %19 : vector<16x128xf32>
      %22 = arith.divf %20, %21 : vector<16x128xf32>
      %c0_11 = arith.constant 0 : index
      %c0_12 = arith.constant 0 : index
      %23 = vector.load %arg5[%c0_11, %c0_12] : memref<16x128xf32, #tpu.memory_space<vmem>>, vector<16x128xf32>
      %24 = arith.mulf %22, %17 : vector<16x128xf32>
      %25 = arith.addf %23, %24 : vector<16x128xf32>
      %c0_13 = arith.constant 0 : index
      %c0_14 = arith.constant 0 : index
      %26 = vector.load %arg5[%c0_13, %c0_14] : memref<16x128xf32, #tpu.memory_space<vmem>>, vector<16x128xf32>
      tpu.vector_store %arg5[%c0_13, %c0_14], %25 {strides = array<i32>} : memref<16x128xf32, #tpu.memory_space<vmem>>, vector<16x128xf32>,
      %c0_15 = arith.constant 0 : index
      %c0_16 = arith.constant 0 : index
      %27 = vector.load %arg6[%c0_15, %c0_16] : memref<16x128xf32, #tpu.memory_space<vmem>>, vector<16x128xf32>
      %28 = arith.addf %27, %22 : vector<16x128xf32>
      %c0_17 = arith.constant 0 : index
      %c0_18 = arith.constant 0 : index
      %29 = vector.load %arg6[%c0_17, %c0_18] : memref<16x128xf32, #tpu.memory_space<vmem>>, vector<16x128xf32>
      tpu.vector_store %arg6[%c0_17, %c0_18], %28 {strides = array<i32>} : memref<16x128xf32, #tpu.memory_space<vmem>>, vector<16x128xf32>,
      %c0_19 = arith.constant 0 : index
      %c0_20 = arith.constant 0 : index
      %30 = vector.load %arg7[%c0_19, %c0_20] : memref<16x128xf32, #tpu.memory_space<vmem>>, vector<16x128xf32>
      %31 = arith.addf %30, %17 : vector<16x128xf32>
      %c0_21 = arith.constant 0 : index
      %c0_22 = arith.constant 0 : index
      %32 = vector.load %arg7[%c0_21, %c0_22] : memref<16x128xf32, #tpu.memory_space<vmem>>, vector<16x128xf32>
      tpu.vector_store %arg7[%c0_21, %c0_22], %31 {strides = array<i32>} : memref<16x128xf32, #tpu.memory_space<vmem>>, vector<16x128xf32>,
    } else {
    }
    %c16_i32_4 = arith.constant 16 : i32
    %10 = arith.cmpi slt, %6, %c16_i32_4 : i32
    %11 = arith.extui %10 : i1 to i32
    %c0_i32_5 = arith.constant 0 : i32
    %12 = arith.cmpi ne, %11, %c0_i32_5 : i32
    scf.if %12 {
      %c0 = arith.constant 0 : index
      %c0_8 = arith.constant 0 : index
      %16 = vector.load %arg2[%c0, %c0_8] : memref<16x128xf32, #tpu.memory_space<vmem>>, vector<16x128xf32>
      %c0_9 = arith.constant 0 : index
      %c0_10 = arith.constant 0 : index
      %17 = vector.load %arg3[%c0_9, %c0_10] : memref<16x128xf32, #tpu.memory_space<vmem>>, vector<16x128xf32>
      %18 = arith.negf %16 : vector<16x128xf32>
      %19 = math.exp %18 : vector<16x128xf32>
      %cst = arith.constant 1.000000e+00 : f32
      %20 = vector.broadcast %cst : f32 to vector<16x128xf32>
      %21 = arith.addf %20, %19 : vector<16x128xf32>
      %22 = arith.divf %20, %21 : vector<16x128xf32>
      %23 = tpu.iota {dimensions = array<i32: 0>} : vector<16x128xi32>
      %c0_i32_11 = arith.constant 0 : i32
      %24 = vector.broadcast %c0_i32_11 : i32 to vector<16x128xi32>
      %25 = arith.addi %24, %23 : vector<16x128xi32>
      %26 = vector.broadcast %6 : i32 to vector<16x128xi32>
      %27 = arith.cmpi slt, %25, %26 : vector<16x128xi32>
      %cst_12 = arith.constant 0.000000e+00 : f32
      %28 = vector.broadcast %cst_12 : f32 to vector<16x128xf32>
      %29 = arith.select %27, %22, %28 : vector<16x128xi1>, vector<16x128xf32>
      %cst_13 = arith.constant 0.000000e+00 : f32
      %30 = vector.broadcast %cst_13 : f32 to vector<16x128xf32>
      %31 = arith.select %27, %17, %30 : vector<16x128xi1>, vector<16x128xf32>
      %c0_14 = arith.constant 0 : index
      %c0_15 = arith.constant 0 : index
      %32 = vector.load %arg5[%c0_14, %c0_15] : memref<16x128xf32, #tpu.memory_space<vmem>>, vector<16x128xf32>
      %33 = arith.mulf %29, %31 : vector<16x128xf32>
      %34 = arith.addf %32, %33 : vector<16x128xf32>
      %c0_16 = arith.constant 0 : index
      %c0_17 = arith.constant 0 : index
      %35 = vector.load %arg5[%c0_16, %c0_17] : memref<16x128xf32, #tpu.memory_space<vmem>>, vector<16x128xf32>
      tpu.vector_store %arg5[%c0_16, %c0_17], %34 {strides = array<i32>} : memref<16x128xf32, #tpu.memory_space<vmem>>, vector<16x128xf32>,
      %c0_18 = arith.constant 0 : index
      %c0_19 = arith.constant 0 : index
      %36 = vector.load %arg6[%c0_18, %c0_19] : memref<16x128xf32, #tpu.memory_space<vmem>>, vector<16x128xf32>
      %37 = arith.addf %36, %29 : vector<16x128xf32>
      %c0_20 = arith.constant 0 : index
      %c0_21 = arith.constant 0 : index
      %38 = vector.load %arg6[%c0_20, %c0_21] : memref<16x128xf32, #tpu.memory_space<vmem>>, vector<16x128xf32>
      tpu.vector_store %arg6[%c0_20, %c0_21], %37 {strides = array<i32>} : memref<16x128xf32, #tpu.memory_space<vmem>>, vector<16x128xf32>,
      %c0_22 = arith.constant 0 : index
      %c0_23 = arith.constant 0 : index
      %39 = vector.load %arg7[%c0_22, %c0_23] : memref<16x128xf32, #tpu.memory_space<vmem>>, vector<16x128xf32>
      %40 = arith.addf %39, %31 : vector<16x128xf32>
      %c0_24 = arith.constant 0 : index
      %c0_25 = arith.constant 0 : index
      %41 = vector.load %arg7[%c0_24, %c0_25] : memref<16x128xf32, #tpu.memory_space<vmem>>, vector<16x128xf32>
      tpu.vector_store %arg7[%c0_24, %c0_25], %40 {strides = array<i32>} : memref<16x128xf32, #tpu.memory_space<vmem>>, vector<16x128xf32>,
    } else {
    }
    %c0_i32_6 = arith.constant 0 : i32
    %13 = arith.cmpi eq, %arg1, %c0_i32_6 : i32
    %14 = arith.extui %13 : i1 to i32
    %c0_i32_7 = arith.constant 0 : i32
    %15 = arith.cmpi ne, %14, %c0_i32_7 : i32
    scf.if %15 {
      %c0 = arith.constant 0 : index
      %c0_8 = arith.constant 0 : index
      %16 = vector.load %arg5[%c0, %c0_8] : memref<16x128xf32, #tpu.memory_space<vmem>>, vector<16x128xf32>
      %cst = arith.constant dense<0.000000e+00> : vector<128xf32>
      %17 = vector.multi_reduction <add>, %16, %cst [0] : vector<16x128xf32> to vector<128xf32>
      %c0_9 = arith.constant 0 : index
      %c0_10 = arith.constant 0 : index
      %c0_11 = arith.constant 0 : index
      %18 = vector.load %arg4[%c0_9, %c0_10, %c0_11] : memref<1x3x128xf32, #tpu.memory_space<vmem>>, vector<1x1x128xf32>
      %19 = vector.shape_cast %18 : vector<1x1x128xf32> to vector<128xf32>
      %20 = vector.shape_cast %17 : vector<128xf32> to vector<1x1x128xf32>
      tpu.vector_store %arg4[%c0_9, %c0_10, %c0_11], %20 {strides = array<i32>} : memref<1x3x128xf32, #tpu.memory_space<vmem>>, vector<1x1x128xf32>,
      %c0_12 = arith.constant 0 : index
      %c0_13 = arith.constant 0 : index
      %21 = vector.load %arg6[%c0_12, %c0_13] : memref<16x128xf32, #tpu.memory_space<vmem>>, vector<16x128xf32>
      %cst_14 = arith.constant dense<0.000000e+00> : vector<128xf32>
      %22 = vector.multi_reduction <add>, %21, %cst_14 [0] : vector<16x128xf32> to vector<128xf32>
      %c0_15 = arith.constant 0 : index
      %c1 = arith.constant 1 : index
      %c0_16 = arith.constant 0 : index
      %23 = vector.load %arg4[%c0_15, %c1, %c0_16] : memref<1x3x128xf32, #tpu.memory_space<vmem>>, vector<1x1x128xf32>
      %24 = vector.shape_cast %23 : vector<1x1x128xf32> to vector<128xf32>
      %25 = vector.shape_cast %22 : vector<128xf32> to vector<1x1x128xf32>
      tpu.vector_store %arg4[%c0_15, %c1, %c0_16], %25 {strides = array<i32>} : memref<1x3x128xf32, #tpu.memory_space<vmem>>, vector<1x1x128xf32>,
      %c0_17 = arith.constant 0 : index
      %c0_18 = arith.constant 0 : index
      %26 = vector.load %arg7[%c0_17, %c0_18] : memref<16x128xf32, #tpu.memory_space<vmem>>, vector<16x128xf32>
      %cst_19 = arith.constant dense<0.000000e+00> : vector<128xf32>
      %27 = vector.multi_reduction <add>, %26, %cst_19 [0] : vector<16x128xf32> to vector<128xf32>
      %c0_20 = arith.constant 0 : index
      %c2 = arith.constant 2 : index
      %c0_21 = arith.constant 0 : index
      %28 = vector.load %arg4[%c0_20, %c2, %c0_21] : memref<1x3x128xf32, #tpu.memory_space<vmem>>, vector<1x1x128xf32>
      %29 = vector.shape_cast %28 : vector<1x1x128xf32> to vector<128xf32>
      %30 = vector.shape_cast %27 : vector<128xf32> to vector<1x1x128xf32>
      tpu.vector_store %arg4[%c0_20, %c2, %c0_21], %30 {strides = array<i32>} : memref<1x3x128xf32, #tpu.memory_space<vmem>>, vector<1x1x128xf32>,
    } else {
    }
    return
  }
  func.func @transform_0(%arg0: i32, %arg1: i32) -> (i32, i32) {
    %c1_i32 = arith.constant 1 : i32
    %0 = arith.muli %arg0, %c1_i32 : i32
    %1 = arith.addi %0, %arg1 : i32
    %c0_i32 = arith.constant 0 : i32
    %2 = arith.minsi %1, %c0_i32 : i32
    %c0_i32_0 = arith.constant 0 : i32
    %c0_i32_1 = arith.constant 0 : i32
    return %2, %c0_i32_0 : i32, i32
  }
  func.func @transform_1(%arg0: i32, %arg1: i32) -> (i32, i32) {
    %c1_i32 = arith.constant 1 : i32
    %0 = arith.muli %arg0, %c1_i32 : i32
    %1 = arith.addi %0, %arg1 : i32
    %c0_i32 = arith.constant 0 : i32
    %2 = arith.minsi %1, %c0_i32 : i32
    %c0_i32_0 = arith.constant 0 : i32
    %c0_i32_1 = arith.constant 0 : i32
    return %2, %c0_i32_0 : i32, i32
  }
  func.func @transform_2(%arg0: i32, %arg1: i32) -> (i32, i32, i32) {
    %c0_i32 = arith.constant 0 : i32
    %c0_i32_0 = arith.constant 0 : i32
    %c0_i32_1 = arith.constant 0 : i32
    return %arg0, %c0_i32, %c0_i32_0 : i32, i32, i32
  }
}

</mosaic_0001>

<llo_original>
// kernel: tpu_custom_call.1
$region0: #{tpu_custom_call.1}
  #allocation0 [shape = 'u32[]', space=smem, size = 0x4, offset = 0x4, fixed_abs, tag = 'smem constant byte address 0x4 - core index']
  #allocation1 [shape = 'u32[144,128]{1,0:T(1,128)}', space=vmem, size = 0x12000, scoped, tag = 'internal scratch']
  #allocation2 [shape = 'f32[16,128]{1,0:T(8,128)}', space=vmem, size = 0x2000, scoped, tag = 'scratch operand']
  #allocation3 [shape = 'f32[16,128]{1,0:T(8,128)}', space=vmem, size = 0x2000, scoped, tag = 'scratch operand']
  #allocation4 [shape = 'f32[16,128]{1,0:T(8,128)}', space=vmem, size = 0x2000, scoped, tag = 'scratch operand']
  %s0 = inlined_call_operand.hbm [shape: f32[16,128], index: 0, kind: input, shape index: {}]
  %s1 = inlined_call_operand.hbm [shape: f32[16,128], index: 1, kind: input, shape index: {}]
  %s2 = inlined_call_operand.vmem [shape: f32[1,3,128], index: 2, kind: output, shape index: {}]
  %s3 = sld [smem:[#allocation0]]
  $region42: #{tpu_custom_call.1} parent=0
    _
  %s5 = ssub.s32 1, %s3
  %s6 = scalar_select 0, %s5, %s3
  $region1: #{tpu_custom_call.1} parent=0
    #allocation5 [shape = 'u8[8192]{0}', space=vmem, size = 0x2000, scoped, tag = 'input window, operand 0, single buffered']
    #allocation6 [shape = 's32[1]{0}', space=sflag, size = 0x4, scoped, tag = 'scoped memory for tpu_custom_call.1']
    #allocation7 [shape = 'u8[8192]{0}', space=vmem, size = 0x2000, scoped, tag = 'input window, operand 1, single buffered']
    #allocation8 [shape = 's32[1]{0}', space=sflag, size = 0x4, scoped, tag = 'scoped memory for tpu_custom_call.1']
    %7 = vsyncpa [#allocation6], 0
    %8 = vsyncpa [#allocation8], 0
    // Predicated region
    $region2: #{tpu_custom_call.1} parent=1 // pred_check
      _
    $region3: #{tpu_custom_call.1} parent=1 // pred_check_branch
      %10 = sbr.rel (0) target = $region5
    $region4: #{tpu_custom_call.1} parent=1 // pred_region
      %s11 = sadd.s32 0, 0
      %p12 = scmp.lt.s32.totalorder %s11, 0
      %s13 = scalar_select %p12, %s11, 0
      %s14 = smul.u32 2, %s13
      %s16 = ssub.s32 256, 256
      %17 = vsyncadd [#allocation6], %s16
      %s18 = smul.addr %s14, 128
      %s19 = scalar_lea.hbm %s0, %s18
      %s20 = sshll.u32 [#allocation5], 4
      %s21 = int_to_ptr.vmem [resolvable:$true] %s20
      %26 = dma.hbm_to_vmem [thread:$0]  %s19, 256, %s21, [#allocation6], 128, 128, 8
    $region5: #{tpu_custom_call.1} parent=1 // pred_fallthru
      _
    // Predicated region
    $region6: #{tpu_custom_call.1} parent=1 // pred_check
      _
    $region7: #{tpu_custom_call.1} parent=1 // pred_check_branch
      %28 = sbr.rel (0) target = $region9
    $region8: #{tpu_custom_call.1} parent=1 // pred_region
      %s29 = sadd.s32 0, 0
      %p30 = scmp.lt.s32.totalorder %s29, 0
      %s31 = scalar_select %p30, %s29, 0
      %s32 = smul.u32 2, %s31
      %s34 = ssub.s32 256, 256
      %35 = vsyncadd [#allocation8], %s34
      %s36 = smul.addr %s32, 128
      %s37 = scalar_lea.hbm %s1, %s36
      %s38 = sshll.u32 [#allocation7], 4
      %s39 = int_to_ptr.vmem [resolvable:$true] %s38
      %44 = dma.hbm_to_vmem [thread:$0]  %s37, 256, %s39, [#allocation8], 128, 128, 8
    $region9: #{tpu_custom_call.1} parent=1 // pred_fallthru
      _
    // Predicated region
    $region10: #{tpu_custom_call.1} parent=1 // pred_check
      _
    $region11: #{tpu_custom_call.1} parent=1 // pred_check_branch
      %46 = sbr.rel (0) target = $region13
    $region12: #{tpu_custom_call.1} parent=1 // pred_region
      %47 = dma.done [#allocation6], 256
    $region13: #{tpu_custom_call.1} parent=1 // pred_fallthru
      _
    // Predicated region
    $region14: #{tpu_custom_call.1} parent=1 // pred_check
      _
    $region15: #{tpu_custom_call.1} parent=1 // pred_check_branch
      %49 = sbr.rel (0) target = $region17
    $region16: #{tpu_custom_call.1} parent=1 // pred_region
      %50 = dma.done [#allocation8], 256
    $region17: #{tpu_custom_call.1} parent=1 // pred_fallthru
      _
    %s51 = sadd.s32 0, 0
    %p52 = scmp.lt.s32.totalorder %s51, 0
    %s53 = scalar_select %p52, %s51, 0
    %s54 = smul.u32 2, %s53
    %s55 = sadd.s32 0, 0
    %p56 = scmp.lt.s32.totalorder %s55, 0
    %s57 = scalar_select %p56, %s55, 0
    %s58 = smul.u32 2, %s57
    %p59 = scmp.eq.s32.totalorder 0, 0
    // Predicated region
    $region18: #{tpu_custom_call.1} parent=1 // pred_check
      %p60 = pneg %p59
    $region19: #{tpu_custom_call.1} parent=1 // pred_check_branch
      %62 = sbr.rel (%p60) target = $region21
    $region20: #{tpu_custom_call.1} parent=1 // pred_region
      %63 = vst [vmem:[#allocation2] sm:$0xff] 0.0
      %64 = vst [vmem:[#allocation2 + $0x8] sm:$0xff] 0.0
      %65 = vst [vmem:[#allocation3] sm:$0xff] 0.0
      %66 = vst [vmem:[#allocation3 + $0x8] sm:$0xff] 0.0
      %67 = vst [vmem:[#allocation4] sm:$0xff] 0.0
      %68 = vst [vmem:[#allocation4 + $0x8] sm:$0xff] 0.0
    $region21: #{tpu_custom_call.1} parent=1 // pred_fallthru
      _
    %s69 = sadd.s32 0, 0
    %s70 = smul.u32 %s69, 16
    %s71 = ssub.s32 16, %s70
    %p72 = scmp.ge.s32.totalorder %s71, 16
    // Predicated region
    $region22: #{tpu_custom_call.1} parent=1 // pred_check
      %p73 = pneg %p72
    $region23: #{tpu_custom_call.1} parent=1 // pred_check_branch
      %75 = sbr.rel (%p73) target = $region25
    $region24: #{tpu_custom_call.1} parent=1 // pred_region
      %v76 = vld [vmem:[#allocation5] sm:$0xff]
      %v77 = vld [vmem:[#allocation5 + $0x8] sm:$0xff]
      %v78 = vld [vmem:[#allocation7] sm:$0xff]
      %v79 = vld [vmem:[#allocation7 + $0x8] sm:$0xff]
      %v80 = vxor.u32 %v76, 2147483648
      %v81 = vxor.u32 %v77, 2147483648
      %v82 = vmul.f32 %v80, 1.442695
      %v83 = vpow.pop %v82
      %v84 = vmul.f32 %v81, 1.442695
      %v85 = vpow.pop %v84
      %v86 = vadd.f32 %v83, 1.0
      %v87 = vadd.f32 %v85, 1.0
      %v88 = vrcp.pop %v86
      %v89 = vmul.f32 1.0, %v88
      %v90 = vrcp.pop %v87
      %v91 = vmul.f32 1.0, %v90
      %v92 = vld [vmem:[#allocation2] sm:$0xff]
      %v93 = vld [vmem:[#allocation2 + $0x8] sm:$0xff]
      %v94 = vmul.f32 %v89, %v78
      %v95 = vmul.f32 %v91, %v79
      %v96 = vadd.f32 %v92, %v94
      %v97 = vadd.f32 %v93, %v95
      %98 = vst [vmem:[#allocation2] sm:$0xff] %v96
      %99 = vst [vmem:[#allocation2 + $0x8] sm:$0xff] %v97
      %v100 = vld [vmem:[#allocation3] sm:$0xff]
      %v101 = vld [vmem:[#allocation3 + $0x8] sm:$0xff]
      %v102 = vadd.f32 %v100, %v89
      %v103 = vadd.f32 %v101, %v91
      %104 = vst [vmem:[#allocation3] sm:$0xff] %v102
      %105 = vst [vmem:[#allocation3 + $0x8] sm:$0xff] %v103
      %v106 = vld [vmem:[#allocation4] sm:$0xff]
      %v107 = vld [vmem:[#allocation4 + $0x8] sm:$0xff]
      %v108 = vadd.f32 %v106, %v78
      %v109 = vadd.f32 %v107, %v79
      %110 = vst [vmem:[#allocation4] sm:$0xff] %v108
      %111 = vst [vmem:[#allocation4 + $0x8] sm:$0xff] %v109
    $region25: #{tpu_custom_call.1} parent=1 // pred_fallthru
      _
    %p112 = scmp.lt.s32.totalorder %s71, 16
    // Predicated region
    $region26: #{tpu_custom_call.1} parent=1 // pred_check
      %p113 = pneg %p112
    $region27: #{tpu_custom_call.1} parent=1 // pred_check_branch
      %115 = sbr.rel (%p113) target = $region29
    $region28: #{tpu_custom_call.1} parent=1 // pred_region
      %v116 = vld [vmem:[#allocation5] sm:$0xff]
      %v117 = vld [vmem:[#allocation5 + $0x8] sm:$0xff]
      %v118 = vld [vmem:[#allocation7] sm:$0xff]
      %v119 = vld [vmem:[#allocation7 + $0x8] sm:$0xff]
      %v120 = vxor.u32 %v116, 2147483648
      %v121 = vxor.u32 %v117, 2147483648
      %v122 = vmul.f32 %v120, 1.442695
      %v123 = vpow.pop %v122
      %v124 = vmul.f32 %v121, 1.442695
      %v125 = vpow.pop %v124
      %v126 = vadd.f32 %v123, 1.0
      %v127 = vadd.f32 %v125, 1.0
      %v128 = vrcp.pop %v126
      %v129 = vmul.f32 1.0, %v128
      %v130 = vrcp.pop %v127
      %v131 = vmul.f32 1.0, %v130
      %v132 = vlaneseq
      %v133 = vshrl.u32 %v132, 7
      %v134 = vadd.s32 %v133, 8
      %v135 = vstv %s71
      %vm136 = vcmp.lt.s32.totalorder %v133, %v135
      %vm137 = vcmp.lt.s32.totalorder %v134, %v135
      %v138 = vsel %vm136, %v129, 0.0
      %v139 = vsel %vm137, %v131, 0.0
      %v140 = vsel %vm136, %v118, 0.0
      %v141 = vsel %vm137, %v119, 0.0
      %v142 = vld [vmem:[#allocation2] sm:$0xff]
      %v143 = vld [vmem:[#allocation2 + $0x8] sm:$0xff]
      %v144 = vmul.f32 %v138, %v140
      %v145 = vmul.f32 %v139, %v141
      %v146 = vadd.f32 %v142, %v144
      %v147 = vadd.f32 %v143, %v145
      %148 = vst [vmem:[#allocation2] sm:$0xff] %v146
      %149 = vst [vmem:[#allocation2 + $0x8] sm:$0xff] %v147
      %v150 = vld [vmem:[#allocation3] sm:$0xff]
      %v151 = vld [vmem:[#allocation3 + $0x8] sm:$0xff]
      %v152 = vadd.f32 %v150, %v138
      %v153 = vadd.f32 %v151, %v139
      %154 = vst [vmem:[#allocation3] sm:$0xff] %v152
      %155 = vst [vmem:[#allocation3 + $0x8] sm:$0xff] %v153
      %v156 = vld [vmem:[#allocation4] sm:$0xff]
      %v157 = vld [vmem:[#allocation4 + $0x8] sm:$0xff]
      %v158 = vadd.f32 %v156, %v140
      %v159 = vadd.f32 %v157, %v141
      %160 = vst [vmem:[#allocation4] sm:$0xff] %v158
      %161 = vst [vmem:[#allocation4 + $0x8] sm:$0xff] %v159
    $region29: #{tpu_custom_call.1} parent=1 // pred_fallthru
      _
    // Predicated region
    $region30: #{tpu_custom_call.1} parent=1 // pred_check
      %p162 = pneg %p59
    $region31: #{tpu_custom_call.1} parent=1 // pred_check_branch
      %164 = sbr.rel (%p162) target = $region33
    $region32: #{tpu_custom_call.1} parent=1 // pred_region
      %v165 = vld [vmem:[#allocation2] sm:$0xff]
      %v166 = vld [vmem:[#allocation2 + $0x8] sm:$0xff]
      %v167 = vadd.f32 %v165, %v166
      %v168 = vrot.slane %v167, 4
      %v169 = vadd.f32 %v167, %v168
      %v170 = vrot.slane %v169, 2
      %v171 = vadd.f32 %v169, %v170
      %v172 = vrot.slane %v171, 1
      %v173 = vadd.f32 %v171, %v172
      %174 = vst [vmem:[%s2] sm:$0x1] %v173
      %v175 = vld [vmem:[#allocation3] sm:$0xff]
      %v176 = vld [vmem:[#allocation3 + $0x8] sm:$0xff]
      %v177 = vadd.f32 %v175, %v176
      %v178 = vrot.slane %v177, 4
      %v179 = vadd.f32 %v177, %v178
      %v180 = vrot.slane %v179, 2
      %v181 = vadd.f32 %v179, %v180
      %v182 = vrot.slane %v181, 1
      %v183 = vadd.f32 %v181, %v182
      %184 = vst [vmem:[%s2 + $0x1] sm:$0x1] %v183
      %v185 = vld [vmem:[#allocation4] sm:$0xff]
      %v186 = vld [vmem:[#allocation4 + $0x8] sm:$0xff]
      %v187 = vadd.f32 %v185, %v186
      %v188 = vrot.slane %v187, 4
      %v189 = vadd.f32 %v187, %v188
      %v190 = vrot.slane %v189, 2
      %v191 = vadd.f32 %v189, %v190
      %v192 = vrot.slane %v191, 1
      %v193 = vadd.f32 %v191, %v192
      %194 = vst [vmem:[%s2 + $0x2] sm:$0x1] %v193
    $region33: #{tpu_custom_call.1} parent=1 // pred_fallthru
      _
    // Predicated region
    $region34: #{tpu_custom_call.1} parent=1 // pred_check
      _
    $region35: #{tpu_custom_call.1} parent=1 // pred_check_branch
      %196 = sbr.rel (0) target = $region37
    $region36: #{tpu_custom_call.1} parent=1 // pred_region
      _
    $region37: #{tpu_custom_call.1} parent=1 // pred_fallthru
      _
    // Predicated region
    $region38: #{tpu_custom_call.1} parent=1 // pred_check
      _
    $region39: #{tpu_custom_call.1} parent=1 // pred_check_branch
      %198 = sbr.rel (0) target = $region41
    $region40: #{tpu_custom_call.1} parent=1 // pred_region
      _
    $region41: #{tpu_custom_call.1} parent=1 // pred_fallthru
      _
    %199 = vsyncpa [#allocation6], 1
    %200 = vsyncpa [#allocation8], 1

</llo_original>
